<compile_context>
chip_gen: v5e
topology: v5e:2x2
jax: 0.10.0
libtpu: 0.0.40
codegen_flags: <defaults>
</compile_context>

<pallas_src>
import jax
import jax.numpy as jnp
from jax.experimental import pallas as pl
from jax.experimental.pallas import tpu as pltpu


def time_embedding_kernel(x_ref, w1_ref, b1_ref, w2_ref, b2_ref, o_ref):
    # Hot path: matmul -> SiLU -> matmul, everything resident in VMEM.
    # Cast the (small) activation to the resident weight dtype for the MXU;
    # the weights themselves are never re-cast (no extra HBM traffic).
    x = x_ref[...].astype(w1_ref.dtype)

    # Linear1: MXU matmul with f32 accumulation, bias add in f32.
    h = jnp.dot(x, w1_ref[...], preferred_element_type=jnp.float32)
    h = h + b1_ref[...].astype(jnp.float32)

    # SiLU in f32 (correct on all chips; v5e has no bf16 VPU/EUP path).
    h = h * jax.nn.sigmoid(h)

    # Linear2: cast activation to the second weight's dtype for the MXU
    # operands, accumulate in f32.
    h = h.astype(w2_ref.dtype)
    y = jnp.dot(h, w2_ref[...], preferred_element_type=jnp.float32)
    y = y + b2_ref[...].astype(jnp.float32)

    o_ref[...] = y.astype(o_ref.dtype)


def _sublane_multiple(dtype) -> int:
    # Minimum unmasked sublane tile: 8 rows for 4-byte dtypes, 16 for 2-byte
    # (bf16 packs 2 rows/sublane), 32 for 1-byte.
    itemsize = jnp.dtype(dtype).itemsize
    return max(8, 32 // max(1, itemsize))


def prepare_params(w1, b1, w2, b2, *, weight_dtype=None):
    """One-time parameter preparation (call at init, NOT per forward call).

    Stores the weights resident in `weight_dtype` (e.g. jnp.bfloat16) so the
    per-call weight stream from HBM is halved.  Biases stay f32 (bias add and
    SiLU run in f32 inside the kernel anyway).
    """
    if weight_dtype is not None:
        w1 = w1.astype(weight_dtype)
        w2 = w2.astype(weight_dtype)
    b1 = b1.astype(jnp.float32)
    b2 = b2.astype(jnp.float32)
    return w1, b1, w2, b2


def time_embedding(x, w1, b1, w2, b2):
    """TimeEmbedding forward.

    x:  (B, E)   input timestep embeddings
    w1: (E, H)   Linear1 weight, stored (in, out);  H = 4*E
    b1: (1, H)   Linear1 bias
    w2: (H, H)   Linear2 weight, stored (in, out)
    b2: (1, H)   Linear2 bias

    Weights are used in their resident dtype (quantize once via
    prepare_params); output dtype follows x.
    """
    B, E = x.shape
    H = w1.shape[1]
    assert w1.shape == (E, H)
    assert w2.shape == (H, H)
    assert b1.shape == (1, H) and b2.shape == (1, H)

    # Output dtype follows the *input* x (captured before any padding / casts;
    # do not move this below the pad).
    out_dtype = x.dtype

    # Pad the batch up to the dtype-dependent sublane tile so loads/stores are
    # full unmasked vregs (8 rows for f32, 16 for bf16, 32 for 1-byte dtypes).
    mult = max(_sublane_multiple(x.dtype), _sublane_multiple(out_dtype))
    Bp = ((B + mult - 1) // mult) * mult
    Bp = max(Bp, mult)
    if Bp != B:
        x = jnp.pad(x, ((0, Bp - B), (0, 0)))

    vmem = pl.BlockSpec(memory_space=pltpu.MemorySpace.VMEM)

    # Advisory cost estimate: this call is weight-DMA bound; let XLA schedule
    # neighbours around the ~|w1|+|w2| byte stream.
    nbytes = lambda a: a.size * jnp.dtype(a.dtype).itemsize
    bytes_accessed = int(
        nbytes(x) + nbytes(w1) + nbytes(b1) + nbytes(w2) + nbytes(b2)
        + Bp * H * jnp.dtype(out_dtype).itemsize
    )
    cost = pl.CostEstimate(
        flops=int(2 * Bp * (E * H + H * H)),
        transcendentals=int(Bp * H),          # sigmoid inside SiLU
        bytes_accessed=bytes_accessed,
    )

    # Explicit VMEM budget with headroom (v5e's scoped default is 16 MiB and
    # the f32 residency at E=320,H=1280 is already ~8.3 MiB).
    vmem_limit = min(int(bytes_accessed * 2) + (4 << 20), 48 << 20)

    out = pl.pallas_call(
        time_embedding_kernel,
        out_shape=jax.ShapeDtypeStruct((Bp, H), out_dtype),
        in_specs=[vmem, vmem, vmem, vmem, vmem],
        out_specs=vmem,
        cost_estimate=cost,
        compiler_params=pltpu.CompilerParams(vmem_limit_bytes=vmem_limit),
    )(x, w1, b1, w2, b2)

    if Bp != B:
        out = out[:B]
    return out


def reference(x, w1, b1, w2, b2):
    h = x.astype(jnp.float32) @ w1.astype(jnp.float32) + b1.astype(jnp.float32)
    h = h * jax.nn.sigmoid(h)
    return h @ w2.astype(jnp.float32) + b2.astype(jnp.float32)


if __name__ == "__main__":
    # Small shapes consistent with the module: embd=32 -> hidden 4*embd=128.
    B, E = 2, 32
    H = 4 * E

    key = jax.random.PRNGKey(0)
    kx, k1, kb1, k2, kb2 = jax.random.split(key, 5)

    dtype = jnp.float32
    x = jax.random.normal(kx, (B, E), dtype=dtype)

    # Deterministic nn.Linear-like uniform init, stored transposed as (in, out).
    lim1 = 1.0 / jnp.sqrt(E)
    w1 = jax.random.uniform(k1, (E, H), dtype=dtype, minval=-lim1, maxval=lim1)
    b1 = jax.random.uniform(kb1, (1, H), dtype=dtype, minval=-lim1, maxval=lim1)
    lim2 = 1.0 / jnp.sqrt(H)
    w2 = jax.random.uniform(k2, (H, H), dtype=dtype, minval=-lim2, maxval=lim2)
    b2 = jax.random.uniform(kb2, (1, H), dtype=dtype, minval=-lim2, maxval=lim2)

    # --- f32-resident weights: exact path ---
    pw1, pb1, pw2, pb2 = prepare_params(w1, b1, w2, b2)  # no quantization
    out = jax.block_until_ready(time_embedding(x, pw1, pb1, pw2, pb2))
    ref = reference(x, w1, b1, w2, b2)
    assert out.shape == (B, H)
    assert jnp.allclose(out, ref, atol=1e-5, rtol=1e-5), "f32 mismatch vs reference"

    # --- batched timesteps (the intended production shape) ---
    xb = jax.random.normal(kx, (16, E), dtype=dtype)
    outb = jax.block_until_ready(time_embedding(xb, pw1, pb1, pw2, pb2))
    refb = reference(xb, w1, b1, w2, b2)
    assert jnp.allclose(outb, refb, atol=1e-5, rtol=1e-5), "batched mismatch"

    # --- bf16-resident weights (one-time quantization, looser tolerance) ---
    qw1, qb1, qw2, qb2 = prepare_params(w1, b1, w2, b2, weight_dtype=jnp.bfloat16)
    out_bf = jax.block_until_ready(time_embedding(x, qw1, qb1, qw2, qb2))
    # Reference uses the same quantized weights upcast to f32; residual error
    # comes only from the in-kernel bf16 casts of x and the activation h.
    ref_bf = reference(x, qw1, qb1, qw2, qb2)
    assert out_bf.shape == (B, H)
    assert jnp.allclose(out_bf, ref_bf, atol=3e-2, rtol=3e-2), "bf16 mismatch vs reference"

    print("KERNEL_OK")
</pallas_src>

<mosaic_0001>
module attributes {stable_mosaic.version = 11 : i64} {
  func.func @time_embedding_kernel(%arg0: memref<8x32xf32, #tpu.memory_space<vmem>>, %arg1: memref<32x128xf32, #tpu.memory_space<vmem>>, %arg2: memref<1x128xf32, #tpu.memory_space<vmem>>, %arg3: memref<128x128xf32, #tpu.memory_space<vmem>>, %arg4: memref<1x128xf32, #tpu.memory_space<vmem>>, %arg5: memref<8x128xf32, #tpu.memory_space<vmem>>) attributes {dimension_semantics = [], scalar_prefetch = 0 : i64, scratch_operands = 0 : i64, tpu.core_type = #tpu.core_type<tc>} {
    %c0 = arith.constant 0 : index
    %c0_0 = arith.constant 0 : index
    %0 = vector.load %arg0[%c0, %c0_0] : memref<8x32xf32, #tpu.memory_space<vmem>>, vector<8x32xf32>
    %c0_1 = arith.constant 0 : index
    %c0_2 = arith.constant 0 : index
    %1 = vector.load %arg1[%c0_1, %c0_2] : memref<32x128xf32, #tpu.memory_space<vmem>>, vector<32x128xf32>
    %cst = arith.constant dense<0.000000e+00> : vector<8x128xf32>
    %2 = tpu.matmul %0, %1, %cst {dimension_numbers = #tpu.dot_dimension_numbers<[1], [0], [0], [1], [0, 0, 1, 1], [], []>} : vector<8x32xf32>, vector<32x128xf32>, vector<8x128xf32> -> vector<8x128xf32>
    %c0_3 = arith.constant 0 : index
    %c0_4 = arith.constant 0 : index
    %3 = vector.load %arg2[%c0_3, %c0_4] : memref<1x128xf32, #tpu.memory_space<vmem>>, vector<1x128xf32>
    %4 = vector.broadcast %3 : vector<1x128xf32> to vector<8x128xf32>
    %5 = arith.addf %2, %4 : vector<8x128xf32>
    %6 = arith.negf %5 : vector<8x128xf32>
    %7 = math.exp %6 : vector<8x128xf32>
    %cst_5 = arith.constant 1.000000e+00 : f32
    %8 = vector.broadcast %cst_5 : f32 to vector<8x128xf32>
    %9 = arith.addf %8, %7 : vector<8x128xf32>
    %10 = arith.divf %8, %9 : vector<8x128xf32>
    %11 = arith.mulf %5, %10 : vector<8x128xf32>
    %c0_6 = arith.constant 0 : index
    %c0_7 = arith.constant 0 : index
    %12 = vector.load %arg3[%c0_6, %c0_7] : memref<128x128xf32, #tpu.memory_space<vmem>>, vector<128x128xf32>
    %cst_8 = arith.constant dense<0.000000e+00> : vector<8x128xf32>
    %13 = tpu.matmul %11, %12, %cst_8 {dimension_numbers = #tpu.dot_dimension_numbers<[1], [0], [0], [1], [0, 0, 1, 1], [], []>} : vector<8x128xf32>, vector<128x128xf32>, vector<8x128xf32> -> vector<8x128xf32>
    %c0_9 = arith.constant 0 : index
    %c0_10 = arith.constant 0 : index
    %14 = vector.load %arg4[%c0_9, %c0_10] : memref<1x128xf32, #tpu.memory_space<vmem>>, vector<1x128xf32>
    %15 = vector.broadcast %14 : vector<1x128xf32> to vector<8x128xf32>
    %16 = arith.addf %13, %15 : vector<8x128xf32>
    %c0_11 = arith.constant 0 : index
    %c0_12 = arith.constant 0 : index
    %17 = vector.load %arg5[%c0_11, %c0_12] : memref<8x128xf32, #tpu.memory_space<vmem>>, vector<8x128xf32>
    tpu.vector_store %arg5[%c0_11, %c0_12], %16 {strides = array<i32>} : memref<8x128xf32, #tpu.memory_space<vmem>>, vector<8x128xf32>,
    return
  }
}

</mosaic_0001>

<llo_original>
// kernel: tpu_custom_call.1
$region0: #{tpu_custom_call.1}
  #allocation0 [shape = 'u32[]', space=smem, size = 0x4, offset = 0x4, fixed_abs, tag = 'smem constant byte address 0x4 - core index']
  #allocation1 [shape = 'u32[72,128]{1,0:T(1,128)}', space=vmem, size = 0x9000, scoped, tag = 'internal scratch']
  %s0 = inlined_call_operand.hbm [shape: f32[8,32], index: 0, kind: input, shape index: {}]
  %s1 = inlined_call_operand.hbm [shape: f32[32,128], index: 1, kind: input, shape index: {}]
  %s2 = inlined_call_operand.vmem [shape: f32[1,128], index: 2, kind: input, shape index: {}]
  %s3 = inlined_call_operand.hbm [shape: f32[128,128], index: 3, kind: input, shape index: {}]
  %s4 = inlined_call_operand.vmem [shape: f32[1,128], index: 4, kind: input, shape index: {}]
  %s5 = inlined_call_operand.hbm [shape: f32[8,128], index: 5, kind: output, shape index: {}]
  %s6 = sld [smem:[#allocation0]]
  $region42: #{tpu_custom_call.1} parent=0
    _
  %s8 = ssub.s32 1, %s6
  %s9 = scalar_select 0, %s8, %s6
  $region1: #{tpu_custom_call.1} parent=0
    #allocation2 [shape = 'u8[4096]{0}', space=vmem, size = 0x1000, scoped, tag = 'input window, operand 0, single buffered']
    #allocation3 [shape = 's32[1]{0}', space=sflag, size = 0x4, scoped, tag = 'scoped memory for tpu_custom_call.1']
    #allocation4 [shape = 's32[1]{0}', space=sflag, size = 0x4, scoped, tag = 'scoped memory for tpu_custom_call.1']
    #allocation5 [shape = 'u8[16384]{0}', space=vmem, size = 0x4000, scoped, tag = 'input window, operand 1, single buffered']
    #allocation6 [shape = 's32[1]{0}', space=sflag, size = 0x4, scoped, tag = 'scoped memory for tpu_custom_call.1']
    #allocation7 [shape = 'u8[65536]{0}', space=vmem, size = 0x10000, scoped, tag = 'input window, operand 3, single buffered']
    #allocation8 [shape = 'u8[4096]{0}', space=vmem, size = 0x1000, scoped, tag = 'output window, operand 0, single buffered']
    %10 = vsyncpa [#allocation3], 0
    %11 = vsyncpa [#allocation6], 0
    %12 = vsyncpa [#allocation4], 0
    // Predicated region
    $region2: #{tpu_custom_call.1} parent=1 // pred_check
      _
    $region3: #{tpu_custom_call.1} parent=1 // pred_check_branch
      %14 = sbr.rel (0) target = $region5
    $region4: #{tpu_custom_call.1} parent=1 // pred_region
      %16 = vsyncadd [#allocation3], 0
      %s18 = sshll.u32 %s0, 4
      %s19 = int_to_ptr.hbm [resolvable:$true] %s18
      %s20 = sshll.u32 [#allocation2], 4
      %s21 = int_to_ptr.vmem [resolvable:$true] %s20
      %23 = dma.hbm_to_vmem [thread:$0]  %s19, 128, %s21, [#allocation3]
    $region5: #{tpu_custom_call.1} parent=1 // pred_fallthru
      _
    // Predicated region
    $region6: #{tpu_custom_call.1} parent=1 // pred_check
      _
    $region7: #{tpu_custom_call.1} parent=1 // pred_check_branch
      %25 = sbr.rel (0) target = $region9
    $region8: #{tpu_custom_call.1} parent=1 // pred_region
      %27 = vsyncadd [#allocation6], 0
      %s28 = sshll.u32 %s1, 4
      %s29 = int_to_ptr.hbm [resolvable:$true] %s28
      %s30 = sshll.u32 [#allocation5], 4
      %s31 = int_to_ptr.vmem [resolvable:$true] %s30
      %36 = dma.hbm_to_vmem [thread:$0]  %s29, 512, %s31, [#allocation6], 128, 128, 8
    $region9: #{tpu_custom_call.1} parent=1 // pred_fallthru
      _
    // Predicated region
    $region10: #{tpu_custom_call.1} parent=1 // pred_check
      _
    $region11: #{tpu_custom_call.1} parent=1 // pred_check_branch
      %38 = sbr.rel (0) target = $region13
    $region12: #{tpu_custom_call.1} parent=1 // pred_region
      _
    $region13: #{tpu_custom_call.1} parent=1 // pred_fallthru
      _
    // Predicated region
    $region14: #{tpu_custom_call.1} parent=1 // pred_check
      _
    $region15: #{tpu_custom_call.1} parent=1 // pred_check_branch
      %40 = sbr.rel (0) target = $region17
    $region16: #{tpu_custom_call.1} parent=1 // pred_region
      %42 = vsyncadd [#allocation6], 0
      %s43 = sshll.u32 %s3, 4
      %s44 = int_to_ptr.hbm [resolvable:$true] %s43
      %s45 = sshll.u32 [#allocation7], 4
      %s46 = int_to_ptr.vmem [resolvable:$true] %s45
      %51 = dma.hbm_to_vmem [thread:$0]  %s44, 2048, %s46, [#allocation6], 128, 128, 8
    $region17: #{tpu_custom_call.1} parent=1 // pred_fallthru
      _
    // Predicated region
    $region18: #{tpu_custom_call.1} parent=1 // pred_check
      _
    $region19: #{tpu_custom_call.1} parent=1 // pred_check_branch
      %53 = sbr.rel (0) target = $region21
    $region20: #{tpu_custom_call.1} parent=1 // pred_region
      _
    $region21: #{tpu_custom_call.1} parent=1 // pred_fallthru
      _
    // Predicated region
    $region22: #{tpu_custom_call.1} parent=1 // pred_check
      _
    $region23: #{tpu_custom_call.1} parent=1 // pred_check_branch
      %55 = sbr.rel (0) target = $region25
    $region24: #{tpu_custom_call.1} parent=1 // pred_region
      %57 = dma.done [#allocation3], 128
    $region25: #{tpu_custom_call.1} parent=1 // pred_fallthru
      _
    // Predicated region
    $region26: #{tpu_custom_call.1} parent=1 // pred_check
      _
    $region27: #{tpu_custom_call.1} parent=1 // pred_check_branch
      %59 = sbr.rel (0) target = $region29
    $region28: #{tpu_custom_call.1} parent=1 // pred_region
      %61 = dma.done [#allocation6], 512
    $region29: #{tpu_custom_call.1} parent=1 // pred_fallthru
      _
    // Predicated region
    $region30: #{tpu_custom_call.1} parent=1 // pred_check
      _
    $region31: #{tpu_custom_call.1} parent=1 // pred_check_branch
      %63 = sbr.rel (0) target = $region33
    $region32: #{tpu_custom_call.1} parent=1 // pred_region
      %65 = dma.done [#allocation6], 2048
    $region33: #{tpu_custom_call.1} parent=1 // pred_fallthru
      _
    %v66 = vld [vmem:[#allocation2] sm:$0xff]
    %v67 = vld [vmem:[#allocation5] sm:$0xff]
    %v68 = vld [vmem:[#allocation5 + $0x8] sm:$0xff]
    %v69 = vld [vmem:[#allocation5 + $0x10] sm:$0xff]
    %v70 = vld [vmem:[#allocation5 + $0x18] sm:$0xff]
    %v71 = vld [vmem:[%s2] sm:$0x1]
    %v73 = vperm.slane %v71, 0
    %vm75 = vcmask 261120
    %v77 = vsel %vm75, %v66, 0
    %79 = vmatpush.msra.mxu0 0.0
    %80 = vmatpush.msra.mxu0 0.0
    %81 = vmatpush.msra.mxu0 0.0
    %82 = vmatpush.msra.mxu0 0.0
    %83 = vmatpush.msra.mxu0 0.0
    %84 = vmatpush.msra.mxu0 0.0
    %85 = vmatpush.msra.mxu0 0.0
    %86 = vmatpush.msra.mxu0 0.0
    %87 = vmatpush.msra.mxu0 0.0
    %88 = vmatpush.msra.mxu0 0.0
    %89 = vmatpush.msra.mxu0 0.0
    %90 = vmatpush.msra.mxu0 0.0
    %91 = vmatpush.msra.mxu0 %v70
    %92 = vmatpush.msra.mxu0 %v69
    %93 = vmatpush.msra.mxu0 %v68
    %94 = vmatpush.msra.mxu0 %v67
    %95 = vmatmul.f32.gmra.mxu0 %v77
    %v96 = vpop.f32.mrf.mxu0
    %v97 = vadd.f32 %v73, %v96
    %98 = vdwg.mxu0
    %v99 = vxor.u32 %v97, 2147483648
    %v100 = vmul.f32 %v99, 1.442695
    %v101 = vpow.pop %v100
    %v102 = vadd.f32 %v101, 1.0
    %v103 = vrcp.pop %v102
    %v104 = vmul.f32 %v102, %v103
    %v105 = vsub.f32 1.0, %v104
    %v106 = vmul.f32 %v103, %v105
    %v107 = vadd.f32 %v103, %v106
    %vm108 = vweird.f32 %v102
    %vm109 = vweird.f32 %v103
    %vm110 = vmor %vm108, %vm109
    %v111 = vsel %vm110, %v103, %v107
    %v112 = vand.u32 2147483647, %v102
    %vm113 = vcmp.eq.f32.partialorder %v112, 8.507059e+37
    %v114 = vand.u32 %v102, 2147483648
    %v115 = vor.u32 1.1754944e-38, %v114
    %v116 = vsel %vm113, %v115, %v111
    %v117 = vmul.f32 1.0, %v116
    %v118 = vmul.f32 %v97, %v117
    %v119 = vld [vmem:[#allocation7] sm:$0xff]
    %v120 = vld [vmem:[#allocation7 + $0x8] sm:$0xff]
    %v121 = vld [vmem:[#allocation7 + $0x10] sm:$0xff]
    %v122 = vld [vmem:[#allocation7 + $0x18] sm:$0xff]
    %v123 = vld [vmem:[#allocation7 + $0x20] sm:$0xff]
    %v124 = vld [vmem:[#allocation7 + $0x28] sm:$0xff]
    %v125 = vld [vmem:[#allocation7 + $0x30] sm:$0xff]
    %v126 = vld [vmem:[#allocation7 + $0x38] sm:$0xff]
    %v127 = vld [vmem:[#allocation7 + $0x40] sm:$0xff]
    %v128 = vld [vmem:[#allocation7 + $0x48] sm:$0xff]
    %v129 = vld [vmem:[#allocation7 + $0x50] sm:$0xff]
    %v130 = vld [vmem:[#allocation7 + $0x58] sm:$0xff]
    %v131 = vld [vmem:[#allocation7 + $0x60] sm:$0xff]
    %v132 = vld [vmem:[#allocation7 + $0x68] sm:$0xff]
    %v133 = vld [vmem:[#allocation7 + $0x70] sm:$0xff]
    %v134 = vld [vmem:[#allocation7 + $0x78] sm:$0xff]
    %v135 = vld [vmem:[%s4] sm:$0x1]
    %v137 = vperm.slane %v135, 0
    %139 = vmatpush.msra.mxu0 %v134
    %140 = vmatpush.msra.mxu0 %v133
    %141 = vmatpush.msra.mxu0 %v132
    %142 = vmatpush.msra.mxu0 %v131
    %143 = vmatpush.msra.mxu0 %v130
    %144 = vmatpush.msra.mxu0 %v129
    %145 = vmatpush.msra.mxu0 %v128
    %146 = vmatpush.msra.mxu0 %v127
    %147 = vmatpush.msra.mxu0 %v126
    %148 = vmatpush.msra.mxu0 %v125
    %149 = vmatpush.msra.mxu0 %v124
    %150 = vmatpush.msra.mxu0 %v123
    %151 = vmatpush.msra.mxu0 %v122
    %152 = vmatpush.msra.mxu0 %v121
    %153 = vmatpush.msra.mxu0 %v120
    %154 = vmatpush.msra.mxu0 %v119
    %155 = vmatmul.f32.gmra.mxu0 %v118
    %v156 = vpop.f32.mrf.mxu0
    %v157 = vadd.f32 %v137, %v156
    %158 = vdwg.mxu0
    %159 = vst [vmem:[#allocation8] sm:$0xff] %v157
    // Predicated region
    $region34: #{tpu_custom_call.1} parent=1 // pred_check
      _
    $region35: #{tpu_custom_call.1} parent=1 // pred_check_branch
      %161 = sbr.rel (0) target = $region37
    $region36: #{tpu_custom_call.1} parent=1 // pred_region
      %163 = vsyncadd [#allocation4], 0
      %s165 = sshll.u32 [#allocation8], 4
      %s166 = int_to_ptr.vmem [resolvable:$true] %s165
      %s167 = sshll.u32 %s5, 4
      %s168 = int_to_ptr.hbm [resolvable:$true] %s167
      %170 = dma.vmem_to_hbm [thread:$0]  %s166, 128, %s168, [#allocation4]
    $region37: #{tpu_custom_call.1} parent=1 // pred_fallthru
      _
    // Predicated region
    $region38: #{tpu_custom_call.1} parent=1 // pred_check
      _
    $region39: #{tpu_custom_call.1} parent=1 // pred_check_branch
      %172 = sbr.rel (0) target = $region41
    $region40: #{tpu_custom_call.1} parent=1 // pred_region
      %174 = dma.done [#allocation4], 128
    $region41: #{tpu_custom_call.1} parent=1 // pred_fallthru
      _
    %175 = vsyncpa [#allocation3], 1
    %176 = vsyncpa [#allocation6], 1
    %177 = vsyncpa [#allocation4], 1

</llo_original>
